<compile_context>
chip_gen: v7x
topology: tpu7x:2x2x1
jax: 0.10.0
libtpu: 0.0.40
codegen_flags: <defaults>
</compile_context>

<pallas_src>
import math

import jax
import jax.numpy as jnp
from jax.experimental import pallas as pl
from jax.experimental.pallas import tpu as pltpu


# ----------------------------------------------------------------------------
# Pallas kernel: fused dilated 3x3 conv over (implicit) channel-concat inputs
#                + folded-BN bias + LeakyReLU(0.01)
# ----------------------------------------------------------------------------
def _make_conv_kernel(n_in, chans, d, H, W, BH, Cout):
    Ctot = sum(chans)
    Hp, Wp = H + 2 * d, W + 2 * d

    def kernel(*refs):
        x_refs = refs[:n_in]          # each: (1, H, W, Ci) bf16 (full image)
        w_ref = refs[n_in]            # (9*Ctot, Cout) bf16, BN scale folded
        b_ref = refs[n_in + 1]        # (1, Cout) f32, folded BN bias
        o_ref = refs[n_in + 2]        # (1, BH, W, Cout) bf16  (one row band)
        xpad_ref = refs[n_in + 3]     # VMEM scratch (Hp, Wp, Ctot) bf16

        band = pl.program_id(1)

        # Build the zero-padded (and channel-concatenated) image in VMEM once
        # per batch element; it stays resident across the row-band steps.
        @pl.when(band == 0)
        def _():
            xpad_ref[...] = jnp.zeros((Hp, Wp, Ctot), jnp.bfloat16)
            off = 0
            for xr, c in zip(x_refs, chans):
                xpad_ref[d:d + H, d:d + W, off:off + c] = xr[0]
                off += c

        # im2col for this band, built entirely in VMEM/vregs: (BH*W, 9*Ctot).
        row0 = pl.multiple_of(band * BH, BH)
        slab = xpad_ref[pl.ds(row0, BH + 2 * d), :, :]     # (BH+2d, Wp, Ctot)
        taps = [slab[i * d:i * d + BH, j * d:j * d + W, :]
                for i in range(3) for j in range(3)]
        cols = jnp.concatenate(taps, axis=-1)              # (BH, W, 9*Ctot)
        cols = cols.reshape(BH * W, 9 * Ctot)

        # One deep-K MXU dot + fused bias-add + LeakyReLU, f32 accumulation.
        y = jnp.dot(cols, w_ref[...], preferred_element_type=jnp.float32)
        y = y + b_ref[...]
        y = jnp.where(y >= 0.0, y, 0.01 * y)               # LeakyReLU(0.01)
        o_ref[...] = y.reshape(1, BH, W, Cout).astype(o_ref.dtype)

    return kernel


def conv3x3_bn_lrelu(xs, w, bias, d=1):
    """Fused dilated 3x3 'same' conv (+ folded BN + LeakyReLU 0.01).

    xs   : a single (N,H,W,C) array or a list of them; a list is convolved as
           if channel-concatenated (concat happens in VMEM, never in HBM).
    w    : (9*sum(C), Cout) bf16 weight, tap-major rows, BN scale folded.
    bias : (Cout,) f32 folded BN bias.
    Returns (N,H,W,Cout) bf16.
    """
    if not isinstance(xs, (list, tuple)):
        xs = [xs]
    xs = [x.astype(jnp.bfloat16) for x in xs]
    N, H, W = xs[0].shape[0], xs[0].shape[1], xs[0].shape[2]
    chans = tuple(int(x.shape[-1]) for x in xs)
    Ctot = sum(chans)
    Cout = int(w.shape[-1])
    assert int(w.shape[0]) == 9 * Ctot

    BH = 8 if (H % 8 == 0) else H                 # row-band height
    bands = H // BH
    Hp, Wp = H + 2 * d, W + 2 * d

    kern = _make_conv_kernel(len(xs), chans, d, H, W, BH, Cout)
    in_specs = [pl.BlockSpec((1, H, W, c), lambda n, b: (n, 0, 0, 0))
                for c in chans]
    in_specs.append(pl.BlockSpec((9 * Ctot, Cout), lambda n, b: (0, 0)))
    in_specs.append(pl.BlockSpec((1, Cout), lambda n, b: (0, 0)))

    return pl.pallas_call(
        kern,
        out_shape=jax.ShapeDtypeStruct((N, H, W, Cout), jnp.bfloat16),
        grid=(N, bands),
        in_specs=in_specs,
        out_specs=pl.BlockSpec((1, BH, W, Cout), lambda n, b: (n, b, 0, 0)),
        scratch_shapes=[pltpu.VMEM((Hp, Wp, Ctot), jnp.bfloat16)],
        compiler_params=pltpu.CompilerParams(
            dimension_semantics=("parallel", "arbitrary")),
    )(*xs, w.astype(jnp.bfloat16), bias.reshape(1, Cout).astype(jnp.float32))


# ----------------------------------------------------------------------------
# Plain-JAX glue: max-pool (2x2, stride 2, ceil_mode) and bilinear upsample
# ----------------------------------------------------------------------------
def maxpool2x2_ceil(x):
    N, H, W, C = x.shape
    Ho, Wo = -(-H // 2), -(-W // 2)
    ph, pw = Ho * 2 - H, Wo * 2 - W
    if ph or pw:
        x = jnp.pad(x, ((0, 0), (0, ph), (0, pw), (0, 0)),
                    constant_values=-jnp.inf)
    return x.reshape(N, Ho, 2, Wo, 2, C).max(axis=(2, 4))


def _lin_coords(out_n, in_n):
    if in_n == 1 or out_n == 1:
        z = jnp.zeros((out_n,), jnp.float32)
        zi = jnp.zeros((out_n,), jnp.int32)
        return z, zi, zi
    pos = jnp.arange(out_n, dtype=jnp.float32) * (in_n - 1) / (out_n - 1)
    i0 = jnp.floor(pos).astype(jnp.int32)
    i1 = jnp.minimum(i0 + 1, in_n - 1)
    return pos - i0.astype(jnp.float32), i0, i1


def upsample_like(src, tar):
    """Bilinear, align_corners=True (matches F.upsample in the reference),
    computed in bf16 to halve bandwidth."""
    N, H, W, C = src.shape
    Ho, Wo = tar.shape[1], tar.shape[2]
    if (Ho, Wo) == (H, W):
        return src
    s = src.astype(jnp.bfloat16)
    fh, h0, h1 = _lin_coords(Ho, H)
    fw, w0, w1 = _lin_coords(Wo, W)
    fh = fh.astype(jnp.bfloat16)[None, :, None, None]
    fw = fw.astype(jnp.bfloat16)[None, None, :, None]
    r0, r1 = s[:, h0], s[:, h1]
    top = r0[:, :, w0] * (1 - fw) + r0[:, :, w1] * fw
    bot = r1[:, :, w0] * (1 - fw) + r1[:, :, w1] * fw
    out = top * (1 - fh) + bot * fh
    return out.astype(src.dtype)


# ----------------------------------------------------------------------------
# Deterministic parameters (Conv + eval-mode BatchNorm folded into w / bias)
# ----------------------------------------------------------------------------
class ParamGen:
    def __init__(self, seed=0):
        self._key = jax.random.PRNGKey(seed)
        self._n = 0

    def normal(self, shape, std=0.1):
        self._n += 1
        return std * jax.random.normal(jax.random.fold_in(self._key, self._n),
                                       shape, jnp.float32)


def make_rebnconv(pg, in_ch, out_ch):
    """REBNCONV params; weight stored im2col-ready as (9*in_ch, out_ch) bf16."""
    w = pg.normal((3, 3, in_ch, out_ch), std=1.0 / math.sqrt(9 * in_ch))
    b_conv = pg.normal((out_ch,), std=0.01)
    gamma = 1.0 + pg.normal((out_ch,), std=0.05)
    beta = pg.normal((out_ch,), std=0.05)
    run_mean = jnp.zeros((out_ch,), jnp.float32)     # eval-mode BN stats
    run_var = jnp.ones((out_ch,), jnp.float32)
    s = gamma / jnp.sqrt(run_var + 1e-5)
    w_folded = (w * s[None, None, None, :]).reshape(9 * in_ch, out_ch)
    bias = (beta + s * (b_conv - run_mean)).astype(jnp.float32)
    return {"w": w_folded.astype(jnp.bfloat16), "b": bias}


def rebnconv(p, xs, dirate=1):
    return conv3x3_bn_lrelu(xs, p["w"], p["b"], d=dirate)


def make_rsu4(pg, in_ch=3, mid_ch=12, out_ch=3):
    return {
        "cin": make_rebnconv(pg, in_ch, out_ch),
        "c1": make_rebnconv(pg, out_ch, mid_ch),
        "c2": make_rebnconv(pg, mid_ch, mid_ch),
        "c3": make_rebnconv(pg, mid_ch, mid_ch),
        "c4": make_rebnconv(pg, mid_ch, mid_ch),          # dirate=2 at call
        "c3d": make_rebnconv(pg, mid_ch * 2, mid_ch),
        "c2d": make_rebnconv(pg, mid_ch * 2, mid_ch),
        "c1d": make_rebnconv(pg, mid_ch * 2, out_ch),
    }


# ----------------------------------------------------------------------------
# RSU4 forward (NCHW in / NCHW out, matching the PyTorch reference)
# ----------------------------------------------------------------------------
def rsu4_forward(params, x_nchw):
    p = params
    x = jnp.transpose(x_nchw, (0, 2, 3, 1)).astype(jnp.bfloat16)    # NCHW->NHWC

    hxin = rebnconv(p["cin"], x)
    hx1 = rebnconv(p["c1"], hxin)
    hx2 = rebnconv(p["c2"], maxpool2x2_ceil(hx1))
    hx3 = rebnconv(p["c3"], maxpool2x2_ceil(hx2))
    # TODO(synk): DCA attention block source not provided; treated as identity.
    hx4 = rebnconv(p["c4"], hx3, dirate=2)
    hx3d = rebnconv(p["c3d"], [hx4, hx3])                  # concat fused in VMEM
    hx2d = rebnconv(p["c2d"], [upsample_like(hx3d, hx2), hx2])
    hx1d = rebnconv(p["c1d"], [upsample_like(hx2d, hx1), hx1])

    out = hx1d.astype(jnp.float32) + hxin.astype(jnp.float32)
    return jnp.transpose(out, (0, 3, 1, 2))                         # NHWC->NCHW


# ----------------------------------------------------------------------------
# Demo / self-check
# ----------------------------------------------------------------------------
if __name__ == "__main__":
    pg = ParamGen(0)
    IN_CH, MID_CH, OUT_CH = 3, 16, 64
    params = make_rsu4(pg, IN_CH, MID_CH, OUT_CH)
    key = jax.random.PRNGKey(0)

    # --- check 1: single-input dirate=2 fused conv vs XLA reference ----------
    xt = jax.random.normal(jax.random.fold_in(key, 1), (2, 16, 16, MID_CH),
                           jnp.float32)
    pc, d = params["c4"], 2
    got = conv3x3_bn_lrelu(xt, pc["w"], pc["b"], d=d).astype(jnp.float32)
    ref_in = xt.astype(jnp.bfloat16).astype(jnp.float32)
    ref_w = pc["w"].astype(jnp.float32).reshape(3, 3, MID_CH, -1)
    ref = jax.lax.conv_general_dilated(
        ref_in, ref_w, window_strides=(1, 1), padding=((d, d), (d, d)),
        rhs_dilation=(d, d), dimension_numbers=("NHWC", "HWIO", "NHWC"))
    ref = ref + pc["b"].reshape(1, 1, 1, -1)
    ref = jnp.where(ref >= 0, ref, 0.01 * ref)
    ref = ref.astype(jnp.bfloat16).astype(jnp.float32)
    assert bool(jnp.max(jnp.abs(got - ref)) < 5e-2), "conv kernel mismatch"

    # --- check 2: two-input (VMEM-fused concat) conv vs XLA reference --------
    xa = jax.random.normal(jax.random.fold_in(key, 3), (2, 16, 16, MID_CH),
                           jnp.float32)
    xb = jax.random.normal(jax.random.fold_in(key, 4), (2, 16, 16, MID_CH),
                           jnp.float32)
    pcd = params["c3d"]
    got2 = conv3x3_bn_lrelu([xa, xb], pcd["w"], pcd["b"], d=1).astype(jnp.float32)
    cat = jnp.concatenate([xa, xb], -1).astype(jnp.bfloat16).astype(jnp.float32)
    ref_w2 = pcd["w"].astype(jnp.float32).reshape(3, 3, 2 * MID_CH, -1)
    ref2 = jax.lax.conv_general_dilated(
        cat, ref_w2, window_strides=(1, 1), padding=((1, 1), (1, 1)),
        dimension_numbers=("NHWC", "HWIO", "NHWC"))
    ref2 = ref2 + pcd["b"].reshape(1, 1, 1, -1)
    ref2 = jnp.where(ref2 >= 0, ref2, 0.01 * ref2)
    ref2 = ref2.astype(jnp.bfloat16).astype(jnp.float32)
    assert bool(jnp.max(jnp.abs(got2 - ref2)) < 5e-2), "fused-concat conv mismatch"

    # --- full RSU4 forward ----------------------------------------------------
    x = jax.random.normal(jax.random.fold_in(key, 2), (2, IN_CH, 32, 32),
                          jnp.float32)
    fwd = jax.jit(rsu4_forward)
    out = jax.block_until_ready(fwd(params, x))

    assert out.shape == (2, OUT_CH, 32, 32)
    assert bool(jnp.all(jnp.isfinite(out)))
    print("KERNEL_OK")
</pallas_src>

<mosaic_0001>
module attributes {stable_mosaic.version = 11 : i64} {
  func.func @kernel(%arg0: i32, %arg1: i32, %arg2: memref<1x16x16x16xbf16, #tpu.memory_space<vmem>>, %arg3: memref<144x16xbf16, #tpu.memory_space<vmem>>, %arg4: memref<1x16xf32, #tpu.memory_space<vmem>>, %arg5: memref<1x8x16x16xbf16, #tpu.memory_space<vmem>>, %arg6: memref<20x20x16xbf16, #tpu.memory_space<vmem>>) attributes {dimension_semantics = [#tpu.dimension_semantics<parallel>, #tpu.dimension_semantics<arbitrary>], iteration_bounds = array<i64: 2, 2>, scalar_prefetch = 0 : i64, scratch_operands = 1 : i64, tpu.core_type = #tpu.core_type<tc>, window_params = [{transform_indices = @transform_0, window_bounds = array<i64: 1, 16, 16, 16>}, {pipeline_mode = #tpu.pipeline_mode<synchronous>, transform_indices = @transform_1, window_bounds = array<i64: 144, 16>}, {pipeline_mode = #tpu.pipeline_mode<synchronous>, transform_indices = @transform_2, window_bounds = array<i64: 1, 16>}, {transform_indices = @transform_3, window_bounds = array<i64: 1, 8, 16, 16>}]} {
    %c0_i32 = arith.constant 0 : i32
    %0 = arith.cmpi eq, %arg1, %c0_i32 : i32
    %1 = arith.extui %0 : i1 to i32
    %c0_i32_0 = arith.constant 0 : i32
    %2 = arith.cmpi ne, %1, %c0_i32_0 : i32
    scf.if %2 {
      %cst_12 = arith.constant 0.000000e+00 : bf16
      %31 = vector.broadcast %cst_12 : bf16 to vector<20x20x16xbf16>
      %c0_13 = arith.constant 0 : index
      %c0_14 = arith.constant 0 : index
      %c0_15 = arith.constant 0 : index
      %32 = vector.load %arg6[%c0_13, %c0_14, %c0_15] : memref<20x20x16xbf16, #tpu.memory_space<vmem>>, vector<20x20x16xbf16>
      tpu.vector_store %arg6[%c0_13, %c0_14, %c0_15], %31 {strides = array<i32>} : memref<20x20x16xbf16, #tpu.memory_space<vmem>>, vector<20x20x16xbf16>,
      %c0_16 = arith.constant 0 : index
      %c0_17 = arith.constant 0 : index
      %c0_18 = arith.constant 0 : index
      %c0_19 = arith.constant 0 : index
      %33 = vector.load %arg2[%c0_16, %c0_17, %c0_18, %c0_19] : memref<1x16x16x16xbf16, #tpu.memory_space<vmem>>, vector<1x16x16x16xbf16>
      %34 = vector.shape_cast %33 : vector<1x16x16x16xbf16> to vector<16x16x16xbf16>
      %c2 = arith.constant 2 : index
      %c2_20 = arith.constant 2 : index
      %c0_21 = arith.constant 0 : index
      %35 = vector.load %arg6[%c2, %c2_20, %c0_21] : memref<20x20x16xbf16, #tpu.memory_space<vmem>>, vector<16x16x16xbf16>
      tpu.vector_store %arg6[%c2, %c2_20, %c0_21], %34 {strides = array<i32>} : memref<20x20x16xbf16, #tpu.memory_space<vmem>>, vector<16x16x16xbf16>,
    } else {
    }
    %c8_i32 = arith.constant 8 : i32
    %3 = arith.muli %arg1, %c8_i32 : i32
    %4 = tpu.assume_multiple %3, 8 : i32
    %5 = arith.index_cast %4 : i32 to index
    %c0 = arith.constant 0 : index
    %c0_1 = arith.constant 0 : index
    %6 = vector.load %arg6[%5, %c0, %c0_1] : memref<20x20x16xbf16, #tpu.memory_space<vmem>>, vector<12x20x16xbf16>
    %7 = vector.extract_strided_slice %6 {offsets = [0, 0, 0], sizes = [8, 16, 16], strides = [1, 1, 1]} : vector<12x20x16xbf16> to vector<8x16x16xbf16>
    %8 = vector.extract_strided_slice %6 {offsets = [0, 2, 0], sizes = [8, 16, 16], strides = [1, 1, 1]} : vector<12x20x16xbf16> to vector<8x16x16xbf16>
    %9 = vector.extract_strided_slice %6 {offsets = [0, 4, 0], sizes = [8, 16, 16], strides = [1, 1, 1]} : vector<12x20x16xbf16> to vector<8x16x16xbf16>
    %10 = vector.extract_strided_slice %6 {offsets = [2, 0, 0], sizes = [8, 16, 16], strides = [1, 1, 1]} : vector<12x20x16xbf16> to vector<8x16x16xbf16>
    %11 = vector.extract_strided_slice %6 {offsets = [2, 2, 0], sizes = [8, 16, 16], strides = [1, 1, 1]} : vector<12x20x16xbf16> to vector<8x16x16xbf16>
    %12 = vector.extract_strided_slice %6 {offsets = [2, 4, 0], sizes = [8, 16, 16], strides = [1, 1, 1]} : vector<12x20x16xbf16> to vector<8x16x16xbf16>
    %13 = vector.extract_strided_slice %6 {offsets = [4, 0, 0], sizes = [8, 16, 16], strides = [1, 1, 1]} : vector<12x20x16xbf16> to vector<8x16x16xbf16>
    %14 = vector.extract_strided_slice %6 {offsets = [4, 2, 0], sizes = [8, 16, 16], strides = [1, 1, 1]} : vector<12x20x16xbf16> to vector<8x16x16xbf16>
    %15 = vector.extract_strided_slice %6 {offsets = [4, 4, 0], sizes = [8, 16, 16], strides = [1, 1, 1]} : vector<12x20x16xbf16> to vector<8x16x16xbf16>
    %16 = tpu.concatenate %7, %8, %9, %10, %11, %12, %13, %14, %15 in 2 : vector<8x16x16xbf16>, vector<8x16x16xbf16>, vector<8x16x16xbf16>, vector<8x16x16xbf16>, vector<8x16x16xbf16>, vector<8x16x16xbf16>, vector<8x16x16xbf16>, vector<8x16x16xbf16>, vector<8x16x16xbf16> -> vector<8x16x144xbf16>
    %17 = vector.shape_cast %16 : vector<8x16x144xbf16> to vector<128x144xbf16>
    %c0_2 = arith.constant 0 : index
    %c0_3 = arith.constant 0 : index
    %18 = vector.load %arg3[%c0_2, %c0_3] : memref<144x16xbf16, #tpu.memory_space<vmem>>, vector<144x16xbf16>
    %cst = arith.constant dense<0.000000e+00> : vector<128x16xf32>
    %19 = tpu.matmul %17, %18, %cst {dimension_numbers = #tpu.dot_dimension_numbers<[1], [0], [0], [1], [0, 0, 1, 1], [], []>} : vector<128x144xbf16>, vector<144x16xbf16>, vector<128x16xf32> -> vector<128x16xf32>
    %c0_4 = arith.constant 0 : index
    %c0_5 = arith.constant 0 : index
    %20 = vector.load %arg4[%c0_4, %c0_5] : memref<1x16xf32, #tpu.memory_space<vmem>>, vector<1x16xf32>
    %21 = vector.broadcast %20 : vector<1x16xf32> to vector<128x16xf32>
    %22 = arith.addf %19, %21 : vector<128x16xf32>
    %cst_6 = arith.constant 0.000000e+00 : f32
    %23 = vector.broadcast %cst_6 : f32 to vector<128x16xf32>
    %24 = arith.cmpf oge, %22, %23 : vector<128x16xf32>
    %cst_7 = arith.constant 0.00999999977 : f32
    %25 = vector.broadcast %cst_7 : f32 to vector<128x16xf32>
    %26 = arith.mulf %25, %22 : vector<128x16xf32>
    %27 = arith.select %24, %22, %26 : vector<128x16xi1>, vector<128x16xf32>
    %28 = vector.shape_cast %27 : vector<128x16xf32> to vector<1x8x16x16xf32>
    %29 = arith.truncf %28 : vector<1x8x16x16xf32> to vector<1x8x16x16xbf16>
    %c0_8 = arith.constant 0 : index
    %c0_9 = arith.constant 0 : index
    %c0_10 = arith.constant 0 : index
    %c0_11 = arith.constant 0 : index
    %30 = vector.load %arg5[%c0_8, %c0_9, %c0_10, %c0_11] : memref<1x8x16x16xbf16, #tpu.memory_space<vmem>>, vector<1x8x16x16xbf16>
    tpu.vector_store %arg5[%c0_8, %c0_9, %c0_10, %c0_11], %29 {strides = array<i32>} : memref<1x8x16x16xbf16, #tpu.memory_space<vmem>>, vector<1x8x16x16xbf16>,
    return
  }
  func.func @transform_0(%arg0: i32, %arg1: i32) -> (i32, i32, i32, i32) {
    %c0_i32 = arith.constant 0 : i32
    %c0_i32_0 = arith.constant 0 : i32
    %c0_i32_1 = arith.constant 0 : i32
    %c0_i32_2 = arith.constant 0 : i32
    return %arg0, %c0_i32, %c0_i32_0, %c0_i32_1 : i32, i32, i32, i32
  }
  func.func @transform_1(%arg0: i32, %arg1: i32) -> (i32, i32) {
    %c0_i32 = arith.constant 0 : i32
    %c0_i32_0 = arith.constant 0 : i32
    %c0_i32_1 = arith.constant 0 : i32
    return %c0_i32, %c0_i32_0 : i32, i32
  }
  func.func @transform_2(%arg0: i32, %arg1: i32) -> (i32, i32) {
    %c0_i32 = arith.constant 0 : i32
    %c0_i32_0 = arith.constant 0 : i32
    %c0_i32_1 = arith.constant 0 : i32
    return %c0_i32, %c0_i32_0 : i32, i32
  }
  func.func @transform_3(%arg0: i32, %arg1: i32) -> (i32, i32, i32, i32) {
    %c0_i32 = arith.constant 0 : i32
    %c0_i32_0 = arith.constant 0 : i32
    %c0_i32_1 = arith.constant 0 : i32
    return %arg0, %arg1, %c0_i32, %c0_i32_0 : i32, i32, i32, i32
  }
}

</mosaic_0001>

<llo_original>
// kernel: tpu_custom_call.1
$region0: #{tpu_custom_call.1}
  #allocation0 [shape = 'u32[]', space=smem, size = 0x4, offset = 0x4, fixed_abs, tag = 'smem constant byte address 0x4 - core index']
  #allocation1 [shape = 'u32[144,128]{1,0:T(1,128)}', space=vmem, size = 0x12000, scoped, tag = 'internal scratch']
  #allocation2 [shape = 'bf16[20,20,16]{2,1,0:T(8,128)(2,1)}', space=vmem, size = 0x1e000, scoped, tag = 'scratch operand']
  %s0 = inlined_call_operand.hbm [shape: bf16[2,16,16,16], index: 0, kind: input, shape index: {}]
  %s1 = inlined_call_operand.vmem [shape: bf16[144,16], index: 1, kind: input, shape index: {}]
  %s2 = inlined_call_operand.vmem [shape: f32[1,16], index: 2, kind: input, shape index: {}]
  %s3 = inlined_call_operand.hbm [shape: bf16[2,16,16,16], index: 3, kind: output, shape index: {}]
  %s4 = sld [smem:[#allocation0]]
  $region53: #{tpu_custom_call.1} parent=0
    _
  %s6 = ssub.s32 1, %s4
  %s7 = scalar_select 0, %s6, %s4
  $region1: #{tpu_custom_call.1} parent=0
    #allocation3 [shape = 'u8[131072]{0}', space=vmem, size = 0x20000, scoped, tag = 'input window, operand 0']
    #allocation4 [shape = 's32[2]{0}', space=sflag, size = 0x8, scoped, tag = 'scoped memory for tpu_custom_call.1']
    #allocation5 [shape = 's32[2]{0}', space=sflag, size = 0x8, scoped, tag = 'scoped memory for tpu_custom_call.1']
    #allocation6 [shape = 'u8[65536]{0}', space=vmem, size = 0x10000, scoped, tag = 'output window, operand 0']
    %8 = vsyncpa [#allocation4], 0
    %s9 = scalar_lea.sflag [#allocation4], 1
    %10 = vsyncpa %s9, 0
    %11 = vsyncpa [#allocation5], 0
    %s12 = scalar_lea.sflag [#allocation5], 1
    %13 = vsyncpa %s12, 0
    loop: start=0, step=1, limit=6
    $region2: #{tpu_custom_call.1} parent=1 // loop_pre_header
      _
    $region3: #{tpu_custom_call.1} parent=1 // loop_header
      %s15 = sphi 0, %s19
      %p16 = scmp.ge.s32.totalorder %s15, 6
      %s22 = sphi 0, %s34
      %s23 = sphi 0, %s30
      %s24 = sphi 0, %s22
      %s25 = sphi 0, %s23
      %s26 = sphi 0, %s24
      %s27 = sphi 0, %s25
      %s37 = sphi 0, %s39
      %s40 = sphi 0, %s37
      %s41 = sphi 0, %s40
      %s57 = sphi 0, %s41
      %s61 = sphi 0, %s61
      %s63 = sphi 0, %s61
      %s64 = sphi 0, %s63
      %s78 = sphi 0, %s64
      %s82 = sphi 0, %s82
      %s84 = sphi 0, %s82
      %s85 = sphi 0, %s84
      %s99 = sphi 0, %s85
      %s107 = sphi 0, %s109
      %s110 = sphi 0, %s107
      %s111 = sphi 0, %s110
      %s127 = sphi 0, %s111
    $region4: #{tpu_custom_call.1} parent=1 // loop_header_branch
      %18 = sbr.rel (%p16) target = $region8
    $region5: #{tpu_custom_call.1} parent=1 // loop_body
      %s20 = ssub.s32 %s15, 1
      %s21 = ssub.s32 %s15, 2
      %s28 = sadd.s32 1, %s23
      %p29 = scmp.ge.s32.totalorder %s28, 2
      %s30 = scalar_select %p29, 0, %s28
      %s31 = sadd.s32 1, %s22
      %s32 = scalar_select %p29, %s31, %s22
      %p33 = scmp.ge.s32.totalorder %s32, 2
      %s34 = scalar_select %p33, 0, %s32
      %s35 = ssub.s32 %s22, %s34
      %p36 = scmp.eq.s32.totalorder %s35, 0
      %s38 = sadd.s32 %s37, 1
      %s39 = scalar_select %p36, %s37, %s38
      %p42 = pneg %p36
      %p43 = scmp.eq.s32.totalorder %s15, 3
      %p44 = por %p42, %p43
      %p45 = scmp.ne.s32.totalorder %s37, %s40
      %p46 = scmp.eq.s32.totalorder %s15, 0
      %p47 = por %p45, %p46
      %p48 = scmp.ne.s32.totalorder %s37, %s40
      %p49 = scmp.eq.s32.totalorder %s20, 3
      %p50 = por %p48, %p49
      %p51 = scmp.ne.s32.totalorder %s40, %s41
      %p52 = scmp.eq.s32.totalorder %s20, 0
      %p53 = por %p51, %p52
      %p54 = scmp.ne.s32.totalorder %s40, %s41
      %p55 = scmp.eq.s32.totalorder %s21, 3
      %p56 = por %p54, %p55
      %p58 = scmp.ne.s32.totalorder %s41, %s57
      %p59 = scmp.eq.s32.totalorder %s21, 0
      %p60 = por %p58, %p59
      %s62 = sadd.s32 %s61, 1
      %p65 = scmp.eq.s32.totalorder %s15, 3
      %p66 = scmp.ne.s32.totalorder %s61, %s63
      %p67 = scmp.eq.s32.totalorder %s15, 0
      %p68 = por %p66, %p67
      %p69 = scmp.ne.s32.totalorder %s61, %s63
      %p70 = scmp.eq.s32.totalorder %s20, 3
      %p71 = por %p69, %p70
      %p72 = scmp.ne.s32.totalorder %s63, %s64
      %p73 = scmp.eq.s32.totalorder %s20, 0
      %p74 = por %p72, %p73
      %p75 = scmp.ne.s32.totalorder %s63, %s64
      %p76 = scmp.eq.s32.totalorder %s21, 3
      %p77 = por %p75, %p76
      %p79 = scmp.ne.s32.totalorder %s64, %s78
      %p80 = scmp.eq.s32.totalorder %s21, 0
      %p81 = por %p79, %p80
      %s83 = sadd.s32 %s82, 1
      %p86 = scmp.eq.s32.totalorder %s15, 3
      %p87 = scmp.ne.s32.totalorder %s82, %s84
      %p88 = scmp.eq.s32.totalorder %s15, 0
      %p89 = por %p87, %p88
      %p90 = scmp.ne.s32.totalorder %s82, %s84
      %p91 = scmp.eq.s32.totalorder %s20, 3
      %p92 = por %p90, %p91
      %p93 = scmp.ne.s32.totalorder %s84, %s85
      %p94 = scmp.eq.s32.totalorder %s20, 0
      %p95 = por %p93, %p94
      %p96 = scmp.ne.s32.totalorder %s84, %s85
      %p97 = scmp.eq.s32.totalorder %s21, 3
      %p98 = por %p96, %p97
      %p100 = scmp.ne.s32.totalorder %s85, %s99
      %p101 = scmp.eq.s32.totalorder %s21, 0
      %p102 = por %p100, %p101
      %s103 = ssub.s32 %s22, %s34
      %s104 = ssub.s32 %s23, %s30
      %s105 = sor.u32 %s103, %s104
      %p106 = scmp.eq.s32.totalorder %s105, 0
      %s108 = sadd.s32 %s107, 1
      %s109 = scalar_select %p106, %s107, %s108
      %p112 = pneg %p106
      %p113 = scmp.eq.s32.totalorder %s15, 3
      %p114 = por %p112, %p113
      %p115 = scmp.ne.s32.totalorder %s107, %s110
      %p116 = scmp.eq.s32.totalorder %s15, 0
      %p117 = por %p115, %p116
      %p118 = scmp.ne.s32.totalorder %s107, %s110
      %p119 = scmp.eq.s32.totalorder %s20, 3
      %p120 = por %p118, %p119
      %p121 = scmp.ne.s32.totalorder %s110, %s111
      %p122 = scmp.eq.s32.totalorder %s20, 0
      %p123 = por %p121, %p122
      %p124 = scmp.ne.s32.totalorder %s110, %s111
      %p125 = scmp.eq.s32.totalorder %s21, 3
      %p126 = por %p124, %p125
      %p128 = scmp.ne.s32.totalorder %s111, %s127
      %p129 = scmp.eq.s32.totalorder %s21, 0
      %p130 = por %p128, %p129
      %p131 = scmp.le.s32.totalorder 1, %s15
      %p132 = scmp.lt.s32.totalorder %s15, 5
      %p133 = pnand %p131, %p132
      %p134 = pneg %p133
      // Predicated region
      $region9: #{tpu_custom_call.1} parent=5 // pred_check
        _
      $region10: #{tpu_custom_call.1} parent=5 // pred_check_branch
        %136 = sbr.rel (%p133) target = $region12
      $region11: #{tpu_custom_call.1} parent=5 // pred_region
        %s137 = ssub.s32 %s15, 1
        // Predicated region
        $region13: #{tpu_custom_call.1} parent=11 // pred_check
          %p138 = pneg %p74
        $region14: #{tpu_custom_call.1} parent=11 // pred_check_branch
          %140 = sbr.rel (%p138) target = $region16
        $region15: #{tpu_custom_call.1} parent=11 // pred_region
          _
        $region16: #{tpu_custom_call.1} parent=11 // pred_fallthru
          _
        // Predicated region
        $region17: #{tpu_custom_call.1} parent=11 // pred_check
          %p141 = pneg %p95
        $region18: #{tpu_custom_call.1} parent=11 // pred_check_branch
          %143 = sbr.rel (%p141) target = $region20
        $region19: #{tpu_custom_call.1} parent=11 // pred_region
          _
        $region20: #{tpu_custom_call.1} parent=11 // pred_fallthru
          _
      $region12: #{tpu_custom_call.1} parent=5 // pred_fallthru
        _
      %p144 = scmp.lt.s32.totalorder %s15, 4
      // Predicated region
      $region21: #{tpu_custom_call.1} parent=5 // pred_check
        %p145 = pneg %p144
      $region22: #{tpu_custom_call.1} parent=5 // pred_check_branch
        %147 = sbr.rel (%p145) target = $region24
      $region23: #{tpu_custom_call.1} parent=5 // pred_region
        // Predicated region
        $region25: #{tpu_custom_call.1} parent=23 // pred_check
          %p148 = pneg %p47
        $region26: #{tpu_custom_call.1} parent=23 // pred_check_branch
          %150 = sbr.rel (%p148) target = $region28
        $region27: #{tpu_custom_call.1} parent=23 // pred_region
          %s151 = sand.u32 %s37, 1
          %s152 = scalar_lea.sflag [#allocation4], %s151
          %s153 = sand.u32 %s37, 1
          %s154 = smul.addr %s153, 128
          %s155 = scalar_lea.vmem [#allocation3], %s154
          %s157 = ssub.s32 2048, 2048
          %158 = vsyncadd %s152, %s157
          %s159 = smul.addr %s22, 32
          %s160 = smul.addr %s159, 64
          %s161 = scalar_lea.hbm %s0, %s160
          %s162 = sshll.u32 %s155, 4
          %s163 = int_to_ptr.vmem [resolvable:$true] %s162
          %168 = dma.hbm_to_vmem [thread:$0]  %s161, 2048, %s163, %s152, 64, 64, 4
        $region28: #{tpu_custom_call.1} parent=23 // pred_fallthru
          _
      $region24: #{tpu_custom_call.1} parent=5 // pred_fallthru
        _
      %p169 = scmp.le.s32.totalorder 1, %s15
      %p170 = scmp.lt.s32.totalorder %s15, 5
      %p171 = pnand %p169, %p170
      %p172 = pneg %p171
      // Predicated region
      $region29: #{tpu_custom_call.1} parent=5 // pred_check
        _
      $region30: #{tpu_custom_call.1} parent=5 // pred_check_branch
        %174 = sbr.rel (%p171) target = $region32
      $region31: #{tpu_custom_call.1} parent=5 // pred_region
        %s175 = ssub.s32 %s15, 1
        %s176 = sand.u32 %s40, 1
        %s177 = scalar_lea.sflag [#allocation4], %s176
        %s178 = sand.u32 %s40, 1
        %s179 = smul.addr %s178, 128
        %s180 = scalar_lea.vmem [#allocation3], %s179
        // Predicated region
        $region33: #{tpu_custom_call.1} parent=31 // pred_check
          %p181 = pneg %p53
        $region34: #{tpu_custom_call.1} parent=31 // pred_check_branch
          %183 = sbr.rel (%p181) target = $region36
        $region35: #{tpu_custom_call.1} parent=31 // pred_region
          %184 = dma.done %s177, 2048
        $region36: #{tpu_custom_call.1} parent=31 // pred_fallthru
          _
        %s185 = sand.u32 %s40, 1
        %s186 = scalar_lea.sflag [#allocation4], %s185
        %s187 = sand.u32 %s40, 1
        %s188 = smul.addr %s187, 128
        %s189 = scalar_lea.vmem [#allocation3], %s188
        %p190 = pneg %p53
        %p191 = pneg %p50
        %p192 = pneg %p74
        %p193 = pneg %p71
        %p194 = pneg %p95
        %p195 = pneg %p92
        %p196 = pneg %p123
        %p197 = pneg %p120
        %s198 = sand.u32 %s110, 1
        %s199 = scalar_lea.sflag [#allocation5], %s198
        %s200 = sand.u32 %s110, 1
        %s201 = smul.addr %s200, 64
        %s202 = scalar_lea.vmem [#allocation6], %s201
        %s203 = smul.u32 8, %s25
        %p205 = scmp.eq.s32.totalorder %s25, 0
        // Predicated region
        $region37: #{tpu_custom_call.1} parent=31 // pred_check
          %p206 = pneg %p205
        $region38: #{tpu_custom_call.1} parent=31 // pred_check_branch
          %208 = sbr.rel (%p206) target = $region40
        $region39: #{tpu_custom_call.1} parent=31 // pred_region
          %vm209 = vcmask 125952
          %210 = vst.msk [vmem:[#allocation2] sm:$0xf] %vm209, 0
          %211 = vst.msk [vmem:[#allocation2 + $0x4] sm:$0xf] %vm209, 0
          %vm212 = vcmask 123904
          %213 = vst.msk [vmem:[#allocation2 + $0x8] sm:$0x3] %vm212, 0
          %214 = vst.msk [vmem:[#allocation2 + $0xc] sm:$0xf] %vm209, 0
          %215 = vst.msk [vmem:[#allocation2 + $0x10] sm:$0xf] %vm209, 0
          %216 = vst.msk [vmem:[#allocation2 + $0x14] sm:$0x3] %vm212, 0
          %217 = vst.msk [vmem:[#allocation2 + $0x18] sm:$0xf] %vm209, 0
          %218 = vst.msk [vmem:[#allocation2 + $0x1c] sm:$0xf] %vm209, 0
          %219 = vst.msk [vmem:[#allocation2 + $0x20] sm:$0x3] %vm212, 0
          %220 = vst.msk [vmem:[#allocation2 + $0x24] sm:$0xf] %vm209, 0
          %221 = vst.msk [vmem:[#allocation2 + $0x28] sm:$0xf] %vm209, 0
          %222 = vst.msk [vmem:[#allocation2 + $0x2c] sm:$0x3] %vm212, 0
          %223 = vst.msk [vmem:[#allocation2 + $0x30] sm:$0xf] %vm209, 0
          %224 = vst.msk [vmem:[#allocation2 + $0x34] sm:$0xf] %vm209, 0
          %225 = vst.msk [vmem:[#allocation2 + $0x38] sm:$0x3] %vm212, 0
          %226 = vst.msk [vmem:[#allocation2 + $0x3c] sm:$0xf] %vm209, 0
          %227 = vst.msk [vmem:[#allocation2 + $0x40] sm:$0xf] %vm209, 0
          %228 = vst.msk [vmem:[#allocation2 + $0x44] sm:$0x3] %vm212, 0
          %229 = vst.msk [vmem:[#allocation2 + $0x48] sm:$0xf] %vm209, 0
          %230 = vst.msk [vmem:[#allocation2 + $0x4c] sm:$0xf] %vm209, 0
          %231 = vst.msk [vmem:[#allocation2 + $0x50] sm:$0x3] %vm212, 0
          %232 = vst.msk [vmem:[#allocation2 + $0x54] sm:$0xf] %vm209, 0
          %233 = vst.msk [vmem:[#allocation2 + $0x58] sm:$0xf] %vm209, 0
          %234 = vst.msk [vmem:[#allocation2 + $0x5c] sm:$0x3] %vm212, 0
          %235 = vst.msk [vmem:[#allocation2 + $0x60] sm:$0xf] %vm209, 0
          %236 = vst.msk [vmem:[#allocation2 + $0x64] sm:$0xf] %vm209, 0
          %237 = vst.msk [vmem:[#allocation2 + $0x68] sm:$0x3] %vm212, 0
          %238 = vst.msk [vmem:[#allocation2 + $0x6c] sm:$0xf] %vm209, 0
          %239 = vst.msk [vmem:[#allocation2 + $0x70] sm:$0xf] %vm209, 0
          %240 = vst.msk [vmem:[#allocation2 + $0x74] sm:$0x3] %vm212, 0
          %241 = vst.msk [vmem:[#allocation2 + $0x78] sm:$0xf] %vm209, 0
          %242 = vst.msk [vmem:[#allocation2 + $0x7c] sm:$0xf] %vm209, 0
          %243 = vst.msk [vmem:[#allocation2 + $0x80] sm:$0x3] %vm212, 0
          %244 = vst.msk [vmem:[#allocation2 + $0x84] sm:$0xf] %vm209, 0
          %245 = vst.msk [vmem:[#allocation2 + $0x88] sm:$0xf] %vm209, 0
          %246 = vst.msk [vmem:[#allocation2 + $0x8c] sm:$0x3] %vm212, 0
          %247 = vst.msk [vmem:[#allocation2 + $0x90] sm:$0xf] %vm209, 0
          %248 = vst.msk [vmem:[#allocation2 + $0x94] sm:$0xf] %vm209, 0
          %249 = vst.msk [vmem:[#allocation2 + $0x98] sm:$0x3] %vm212, 0
          %250 = vst.msk [vmem:[#allocation2 + $0x9c] sm:$0xf] %vm209, 0
          %251 = vst.msk [vmem:[#allocation2 + $0xa0] sm:$0xf] %vm209, 0
          %252 = vst.msk [vmem:[#allocation2 + $0xa4] sm:$0x3] %vm212, 0
          %253 = vst.msk [vmem:[#allocation2 + $0xa8] sm:$0xf] %vm209, 0
          %254 = vst.msk [vmem:[#allocation2 + $0xac] sm:$0xf] %vm209, 0
          %255 = vst.msk [vmem:[#allocation2 + $0xb0] sm:$0x3] %vm212, 0
          %256 = vst.msk [vmem:[#allocation2 + $0xb4] sm:$0xf] %vm209, 0
          %257 = vst.msk [vmem:[#allocation2 + $0xb8] sm:$0xf] %vm209, 0
          %258 = vst.msk [vmem:[#allocation2 + $0xbc] sm:$0x3] %vm212, 0
          %259 = vst.msk [vmem:[#allocation2 + $0xc0] sm:$0xf] %vm209, 0
          %260 = vst.msk [vmem:[#allocation2 + $0xc4] sm:$0xf] %vm209, 0
          %261 = vst.msk [vmem:[#allocation2 + $0xc8] sm:$0x3] %vm212, 0
          %262 = vst.msk [vmem:[#allocation2 + $0xcc] sm:$0xf] %vm209, 0
          %263 = vst.msk [vmem:[#allocation2 + $0xd0] sm:$0xf] %vm209, 0
          %264 = vst.msk [vmem:[#allocation2 + $0xd4] sm:$0x3] %vm212, 0
          %265 = vst.msk [vmem:[#allocation2 + $0xd8] sm:$0xf] %vm209, 0
          %266 = vst.msk [vmem:[#allocation2 + $0xdc] sm:$0xf] %vm209, 0
          %267 = vst.msk [vmem:[#allocation2 + $0xe0] sm:$0x3] %vm212, 0
          %268 = vst.msk [vmem:[#allocation2 + $0xe4] sm:$0xf] %vm209, 0
          %269 = vst.msk [vmem:[#allocation2 + $0xe8] sm:$0xf] %vm209, 0
          %270 = vst.msk [vmem:[#allocation2 + $0xec] sm:$0x3] %vm212, 0
          %v271 = vld [vmem:[%s180] sm:$0xf]
          %v272 = vld [vmem:[%s180 + $0x4] sm:$0xf]
          %v273 = vld [vmem:[%s180 + $0x8] sm:$0xf]
          %v274 = vld [vmem:[%s180 + $0xc] sm:$0xf]
          %v275 = vld [vmem:[%s180 + $0x10] sm:$0xf]
          %v276 = vld [vmem:[%s180 + $0x14] sm:$0xf]
          %v277 = vld [vmem:[%s180 + $0x18] sm:$0xf]
          %v278 = vld [vmem:[%s180 + $0x1c] sm:$0xf]
          %v279 = vld [vmem:[%s180 + $0x20] sm:$0xf]
          %v280 = vld [vmem:[%s180 + $0x24] sm:$0xf]
          %v281 = vld [vmem:[%s180 + $0x28] sm:$0xf]
          %v282 = vld [vmem:[%s180 + $0x2c] sm:$0xf]
          %v283 = vld [vmem:[%s180 + $0x30] sm:$0xf]
          %v284 = vld [vmem:[%s180 + $0x34] sm:$0xf]
          %v285 = vld [vmem:[%s180 + $0x38] sm:$0xf]
          %v286 = vld [vmem:[%s180 + $0x3c] sm:$0xf]
          %v287 = vld [vmem:[%s180 + $0x40] sm:$0xf]
          %v288 = vld [vmem:[%s180 + $0x44] sm:$0xf]
          %v289 = vld [vmem:[%s180 + $0x48] sm:$0xf]
          %v290 = vld [vmem:[%s180 + $0x4c] sm:$0xf]
          %v291 = vld [vmem:[%s180 + $0x50] sm:$0xf]
          %v292 = vld [vmem:[%s180 + $0x54] sm:$0xf]
          %v293 = vld [vmem:[%s180 + $0x58] sm:$0xf]
          %v294 = vld [vmem:[%s180 + $0x5c] sm:$0xf]
          %v295 = vld [vmem:[%s180 + $0x60] sm:$0xf]
          %v296 = vld [vmem:[%s180 + $0x64] sm:$0xf]
          %v297 = vld [vmem:[%s180 + $0x68] sm:$0xf]
          %v298 = vld [vmem:[%s180 + $0x6c] sm:$0xf]
          %v299 = vld [vmem:[%s180 + $0x70] sm:$0xf]
          %v300 = vld [vmem:[%s180 + $0x74] sm:$0xf]
          %v301 = vld [vmem:[%s180 + $0x78] sm:$0xf]
          %v302 = vld [vmem:[%s180 + $0x7c] sm:$0xf]
          %vm335 = vcmask 1040384
          %vm336 = vcmask 1044484
          %vm337 = vmor %vm335, %vm336
          %v338 = vrot.slane %v271, 7
          %v339 = vrot.slane %v338, 4
          %v340 = vrot.slane %v272, 7
          %v341 = vsel %vm337, %v339, %v340
          %v342 = vrot.slane %v340, 4
          %v343 = vrot.slane %v273, 7
          %v344 = vrot.slane %v343, 4
          %v345 = vrot.slane %v274, 7
          %v346 = vsel %vm337, %v344, %v345
          %v347 = vrot.slane %v345, 4
          %v348 = vrot.slane %v275, 7
          %v349 = vrot.slane %v348, 4
          %v350 = vrot.slane %v276, 7
          %v351 = vsel %vm337, %v349, %v350
          %v352 = vrot.slane %v350, 4
          %v353 = vrot.slane %v277, 7
          %v354 = vrot.slane %v353, 4
          %v355 = vrot.slane %v278, 7
          %v356 = vsel %vm337, %v354, %v355
          %v357 = vrot.slane %v355, 4
          %v358 = vrot.slane %v279, 7
          %v359 = vrot.slane %v358, 4
          %v360 = vrot.slane %v280, 7
          %v361 = vsel %vm337, %v359, %v360
          %v362 = vrot.slane %v360, 4
          %v363 = vrot.slane %v281, 7
          %v364 = vrot.slane %v363, 4
          %v365 = vrot.slane %v282, 7
          %v366 = vsel %vm337, %v364, %v365
          %v367 = vrot.slane %v365, 4
          %v368 = vrot.slane %v283, 7
          %v369 = vrot.slane %v368, 4
          %v370 = vrot.slane %v284, 7
          %v371 = vsel %vm337, %v369, %v370
          %v372 = vrot.slane %v370, 4
          %v373 = vrot.slane %v285, 7
          %v374 = vrot.slane %v373, 4
          %v375 = vrot.slane %v286, 7
          %v376 = vsel %vm337, %v374, %v375
          %v377 = vrot.slane %v375, 4
          %v378 = vrot.slane %v287, 7
          %v379 = vrot.slane %v378, 4
          %v380 = vrot.slane %v288, 7
          %v381 = vsel %vm337, %v379, %v380
          %v382 = vrot.slane %v380, 4
          %v383 = vrot.slane %v289, 7
          %v384 = vrot.slane %v383, 4
          %v385 = vrot.slane %v290, 7
          %v386 = vsel %vm337, %v384, %v385
          %v387 = vrot.slane %v385, 4
          %v388 = vrot.slane %v291, 7
          %v389 = vrot.slane %v388, 4
          %v390 = vrot.slane %v292, 7
          %v391 = vsel %vm337, %v389, %v390
          %v392 = vrot.slane %v390, 4
          %v393 = vrot.slane %v293, 7
          %v394 = vrot.slane %v393, 4
          %v395 = vrot.slane %v294, 7
          %v396 = vsel %vm337, %v394, %v395
          %v397 = vrot.slane %v395, 4
          %v398 = vrot.slane %v295, 7
          %v399 = vrot.slane %v398, 4
          %v400 = vrot.slane %v296, 7
          %v401 = vsel %vm337, %v399, %v400
          %v402 = vrot.slane %v400, 4
          %v403 = vrot.slane %v297, 7
          %v404 = vrot.slane %v403, 4
          %v405 = vrot.slane %v298, 7
          %v406 = vsel %vm337, %v404, %v405
          %v407 = vrot.slane %v405, 4
          %v408 = vrot.slane %v299, 7
          %v409 = vrot.slane %v408, 4
          %v410 = vrot.slane %v300, 7
          %v411 = vsel %vm337, %v409, %v410
          %v412 = vrot.slane %v410, 4
          %v413 = vrot.slane %v301, 7
          %v414 = vrot.slane %v413, 4
          %v415 = vrot.slane %v302, 7
          %v416 = vsel %vm337, %v414, %v415
          %v417 = vrot.slane %v415, 4
          %s466 = scalar_lea.vmem [#allocation2], 24
          %vm467 = vcmask 125953
          %468 = vst.msk [vmem:[%s466] sm:$0xe] %vm467, %v338
          %469 = vst.msk [vmem:[%s466 + $0x4] sm:$0xf] %vm209, %v341
          %vm470 = vcmask 122880
          %471 = vst.msk [vmem:[%s466 + $0x8] sm:$0x1] %vm470, %v342
          %472 = vst.msk [vmem:[%s466 + $0xc] sm:$0xe] %vm467, %v343
          %473 = vst.msk [vmem:[%s466 + $0x10] sm:$0xf] %vm209, %v346
          %474 = vst.msk [vmem:[%s466 + $0x14] sm:$0x1] %vm470, %v347
          %475 = vst.msk [vmem:[%s466 + $0x18] sm:$0xe] %vm467, %v348
          %476 = vst.msk [vmem:[%s466 + $0x1c] sm:$0xf] %vm209, %v351
          %477 = vst.msk [vmem:[%s466 + $0x20] sm:$0x1] %vm470, %v352
          %478 = vst.msk [vmem:[%s466 + $0x24] sm:$0xe] %vm467, %v353
          %479 = vst.msk [vmem:[%s466 + $0x28] sm:$0xf] %vm209, %v356
          %480 = vst.msk [vmem:[%s466 + $0x2c] sm:$0x1] %vm470, %v357
          %481 = vst.msk [vmem:[%s466 + $0x30] sm:$0xe] %vm467, %v358
          %482 = vst.msk [vmem:[%s466 + $0x34] sm:$0xf] %vm209, %v361
          %483 = vst.msk [vmem:[%s466 + $0x38] sm:$0x1] %vm470, %v362
          %484 = vst.msk [vmem:[%s466 + $0x3c] sm:$0xe] %vm467, %v363
          %485 = vst.msk [vmem:[%s466 + $0x40] sm:$0xf] %vm209, %v366
          %486 = vst.msk [vmem:[%s466 + $0x44] sm:$0x1] %vm470, %v367
          %487 = vst.msk [vmem:[%s466 + $0x48] sm:$0xe] %vm467, %v368
          %488 = vst.msk [vmem:[%s466 + $0x4c] sm:$0xf] %vm209, %v371
          %489 = vst.msk [vmem:[%s466 + $0x50] sm:$0x1] %vm470, %v372
          %490 = vst.msk [vmem:[%s466 + $0x54] sm:$0xe] %vm467, %v373
          %491 = vst.msk [vmem:[%s466 + $0x58] sm:$0xf] %vm209, %v376
          %492 = vst.msk [vmem:[%s466 + $0x5c] sm:$0x1] %vm470, %v377
          %493 = vst.msk [vmem:[%s466 + $0x60] sm:$0xe] %vm467, %v378
          %494 = vst.msk [vmem:[%s466 + $0x64] sm:$0xf] %vm209, %v381
          %495 = vst.msk [vmem:[%s466 + $0x68] sm:$0x1] %vm470, %v382
          %496 = vst.msk [vmem:[%s466 + $0x6c] sm:$0xe] %vm467, %v383
          %497 = vst.msk [vmem:[%s466 + $0x70] sm:$0xf] %vm209, %v386
          %498 = vst.msk [vmem:[%s466 + $0x74] sm:$0x1] %vm470, %v387
          %499 = vst.msk [vmem:[%s466 + $0x78] sm:$0xe] %vm467, %v388
          %500 = vst.msk [vmem:[%s466 + $0x7c] sm:$0xf] %vm209, %v391
          %501 = vst.msk [vmem:[%s466 + $0x80] sm:$0x1] %vm470, %v392
          %502 = vst.msk [vmem:[%s466 + $0x84] sm:$0xe] %vm467, %v393
          %503 = vst.msk [vmem:[%s466 + $0x88] sm:$0xf] %vm209, %v396
          %504 = vst.msk [vmem:[%s466 + $0x8c] sm:$0x1] %vm470, %v397
          %505 = vst.msk [vmem:[%s466 + $0x90] sm:$0xe] %vm467, %v398
          %506 = vst.msk [vmem:[%s466 + $0x94] sm:$0xf] %vm209, %v401
          %507 = vst.msk [vmem:[%s466 + $0x98] sm:$0x1] %vm470, %v402
          %508 = vst.msk [vmem:[%s466 + $0x9c] sm:$0xe] %vm467, %v403
          %509 = vst.msk [vmem:[%s466 + $0xa0] sm:$0xf] %vm209, %v406
          %510 = vst.msk [vmem:[%s466 + $0xa4] sm:$0x1] %vm470, %v407
          %511 = vst.msk [vmem:[%s466 + $0xa8] sm:$0xe] %vm467, %v408
          %512 = vst.msk [vmem:[%s466 + $0xac] sm:$0xf] %vm209, %v411
          %513 = vst.msk [vmem:[%s466 + $0xb0] sm:$0x1] %vm470, %v412
          %514 = vst.msk [vmem:[%s466 + $0xb4] sm:$0xe] %vm467, %v413
          %515 = vst.msk [vmem:[%s466 + $0xb8] sm:$0xf] %vm209, %v416
          %516 = vst.msk [vmem:[%s466 + $0xbc] sm:$0x1] %vm470, %v417
        $region40: #{tpu_custom_call.1} parent=31 // pred_fallthru
          _
        %s517 = smul.u32 %s25, 8
        %s518 = smul.u32 %s517, 3
        %s519 = smul.addr %s518, 4
        %s520 = scalar_lea.vmem [#allocation2], %s519
        %v521 = vld [vmem:[%s520] sm:$0xf]
        %v522 = vld [vmem:[%s520 + $0x4] sm:$0xf]
        %v523 = vld [vmem:[%s520 + $0x8] sm:$0x3]
        %v524 = vld [vmem:[%s520 + $0xc] sm:$0xf]
        %v525 = vld [vmem:[%s520 + $0x10] sm:$0xf]
        %v526 = vld [vmem:[%s520 + $0x14] sm:$0x3]
        %v527 = vld [vmem:[%s520 + $0x18] sm:$0xf]
        %v528 = vld [vmem:[%s520 + $0x1c] sm:$0xf]
        %v529 = vld [vmem:[%s520 + $0x20] sm:$0x3]
        %v530 = vld [vmem:[%s520 + $0x24] sm:$0xf]
        %v531 = vld [vmem:[%s520 + $0x28] sm:$0xf]
        %v532 = vld [vmem:[%s520 + $0x2c] sm:$0x3]
        %v533 = vld [vmem:[%s520 + $0x30] sm:$0xf]
        %v534 = vld [vmem:[%s520 + $0x34] sm:$0xf]
        %v535 = vld [vmem:[%s520 + $0x38] sm:$0x3]
        %v536 = vld [vmem:[%s520 + $0x3c] sm:$0xf]
        %v537 = vld [vmem:[%s520 + $0x40] sm:$0xf]
        %v538 = vld [vmem:[%s520 + $0x44] sm:$0x3]
        %v539 = vld [vmem:[%s520 + $0x48] sm:$0xf]
        %v540 = vld [vmem:[%s520 + $0x4c] sm:$0xf]
        %v541 = vld [vmem:[%s520 + $0x50] sm:$0x3]
        %v542 = vld [vmem:[%s520 + $0x54] sm:$0xf]
        %v543 = vld [vmem:[%s520 + $0x58] sm:$0xf]
        %v544 = vld [vmem:[%s520 + $0x5c] sm:$0x3]
        %v545 = vld [vmem:[%s520 + $0x60] sm:$0xf]
        %v546 = vld [vmem:[%s520 + $0x64] sm:$0xf]
        %v547 = vld [vmem:[%s520 + $0x68] sm:$0x3]
        %v548 = vld [vmem:[%s520 + $0x6c] sm:$0xf]
        %v549 = vld [vmem:[%s520 + $0x70] sm:$0xf]
        %v550 = vld [vmem:[%s520 + $0x74] sm:$0x3]
        %v551 = vld [vmem:[%s520 + $0x78] sm:$0xf]
        %v552 = vld [vmem:[%s520 + $0x7c] sm:$0xf]
        %v553 = vld [vmem:[%s520 + $0x80] sm:$0x3]
        %v554 = vld [vmem:[%s520 + $0x84] sm:$0xf]
        %v555 = vld [vmem:[%s520 + $0x88] sm:$0xf]
        %v556 = vld [vmem:[%s520 + $0x8c] sm:$0x3]
        %v573 = vunpack.c.l.b16 %v521
        %v574 = vunpack.c.l.b16 %v522
        %v575 = vunpack.c.l.b16 %v524
        %v576 = vunpack.c.l.b16 %v525
        %v577 = vunpack.c.l.b16 %v527
        %v578 = vunpack.c.l.b16 %v528
        %v579 = vunpack.c.l.b16 %v530
        %v580 = vunpack.c.l.b16 %v531
        %v581 = vunpack.c.l.b16 %v533
        %v582 = vunpack.c.l.b16 %v534
        %v583 = vunpack.c.l.b16 %v536
        %v584 = vunpack.c.l.b16 %v537
        %v585 = vunpack.c.l.b16 %v539
        %v586 = vunpack.c.l.b16 %v540
        %v587 = vunpack.c.l.b16 %v542
        %v588 = vunpack.c.l.b16 %v543
        %v589 = vpack.c.b16 %v574, %v573
        %v590 = vpack.c.b16 %v576, %v575
        %v591 = vpack.c.b16 %v578, %v577
        %v592 = vpack.c.b16 %v580, %v579
        %v593 = vpack.c.b16 %v582, %v581
        %v594 = vpack.c.b16 %v584, %v583
        %v595 = vpack.c.b16 %v586, %v585
        %v596 = vpack.c.b16 %v588, %v587
        %v605 = vunpack.c.l.b16 %v523
        %v606 = vunpack.c.l.b16 %v526
        %v607 = vunpack.c.l.b16 %v529
        %v608 = vunpack.c.l.b16 %v532
        %v609 = vunpack.c.l.b16 %v535
        %v610 = vunpack.c.l.b16 %v538
        %v611 = vunpack.c.l.b16 %v541
        %v612 = vunpack.c.l.b16 %v544
        %v613 = vpack.c.b16 %v605, %v605
        %v614 = vpack.c.b16 %v606, %v606
        %v615 = vpack.c.b16 %v607, %v607
        %v616 = vpack.c.b16 %v608, %v608
        %v617 = vpack.c.b16 %v609, %v609
        %v618 = vpack.c.b16 %v610, %v610
        %v619 = vpack.c.b16 %v611, %v611
        %v620 = vpack.c.b16 %v612, %v612
        %vm621 = vcmask 1046528
        %v622 = vrot.slane %v589, 1
        %v623 = vrot.slane %v613, 1
        %v624 = vsel %vm621, %v622, %v623
        %v625 = vrot.slane %v590, 1
        %v626 = vrot.slane %v614, 1
        %v627 = vsel %vm621, %v625, %v626
        %v628 = vrot.slane %v591, 1
        %v629 = vrot.slane %v615, 1
        %v630 = vsel %vm621, %v628, %v629
        %v631 = vrot.slane %v592, 1
        %v632 = vrot.slane %v616, 1
        %v633 = vsel %vm621, %v631, %v632
        %v634 = vrot.slane %v593, 1
        %v635 = vrot.slane %v617, 1
        %v636 = vsel %vm621, %v634, %v635
        %v637 = vrot.slane %v594, 1
        %v638 = vrot.slane %v618, 1
        %v639 = vsel %vm621, %v637, %v638
        %v640 = vrot.slane %v595, 1
        %v641 = vrot.slane %v619, 1
        %v642 = vsel %vm621, %v640, %v641
        %v643 = vrot.slane %v596, 1
        %v644 = vrot.slane %v620, 1
        %v645 = vsel %vm621, %v643, %v644
        %646 = vrot.lane.b32.xlu0 %v624, 16
        %v647 = vpop.permute.xlu0 %646
        %648 = vrot.lane.b32.xlu0 %v627, 16
        %v649 = vpop.permute.xlu0 %648
        %650 = vrot.lane.b32.xlu0 %v630, 16
        %v651 = vpop.permute.xlu0 %650
        %652 = vrot.lane.b32.xlu0 %v633, 16
        %v653 = vpop.permute.xlu0 %652
        %654 = vrot.lane.b32.xlu0 %v636, 16
        %v655 = vpop.permute.xlu0 %654
        %656 = vrot.lane.b32.xlu0 %v639, 16
        %v657 = vpop.permute.xlu0 %656
        %658 = vrot.lane.b32.xlu0 %v642, 16
        %v659 = vpop.permute.xlu0 %658
        %660 = vrot.lane.b32.xlu0 %v645, 16
        %v661 = vpop.permute.xlu0 %660
        %vm662 = vcmask 1045504
        %v663 = vrot.slane %v589, 2
        %v664 = vrot.slane %v613, 2
        %v665 = vsel %vm662, %v663, %v664
        %v666 = vrot.slane %v590, 2
        %v667 = vrot.slane %v614, 2
        %v668 = vsel %vm662, %v666, %v667
        %v669 = vrot.slane %v591, 2
        %v670 = vrot.slane %v615, 2
        %v671 = vsel %vm662, %v669, %v670
        %v672 = vrot.slane %v592, 2
        %v673 = vrot.slane %v616, 2
        %v674 = vsel %vm662, %v672, %v673
        %v675 = vrot.slane %v593, 2
        %v676 = vrot.slane %v617, 2
        %v677 = vsel %vm662, %v675, %v676
        %v678 = vrot.slane %v594, 2
        %v679 = vrot.slane %v618, 2
        %v680 = vsel %vm662, %v678, %v679
        %v681 = vrot.slane %v595, 2
        %v682 = vrot.slane %v619, 2
        %v683 = vsel %vm662, %v681, %v682
        %v684 = vrot.slane %v596, 2
        %v685 = vrot.slane %v620, 2
        %v686 = vsel %vm662, %v684, %v685
        %687 = vrot.lane.b32.xlu0 %v665, 32
        %v688 = vpop.permute.xlu0 %687
        %689 = vrot.lane.b32.xlu0 %v668, 32
        %v690 = vpop.permute.xlu0 %689
        %691 = vrot.lane.b32.xlu0 %v671, 32
        %v692 = vpop.permute.xlu0 %691
        %693 = vrot.lane.b32.xlu0 %v674, 32
        %v694 = vpop.permute.xlu0 %693
        %695 = vrot.lane.b32.xlu0 %v677, 32
        %v696 = vpop.permute.xlu0 %695
        %697 = vrot.lane.b32.xlu0 %v680, 32
        %v698 = vpop.permute.xlu0 %697
        %699 = vrot.lane.b32.xlu0 %v683, 32
        %v700 = vpop.permute.xlu0 %699
        %701 = vrot.lane.b32.xlu0 %v686, 32
        %v702 = vpop.permute.xlu0 %701
        %v707 = vunpack.c.l.b16 %v545
        %v708 = vunpack.c.l.b16 %v546
        %v709 = vunpack.c.l.b16 %v548
        %v710 = vunpack.c.l.b16 %v549
        %v711 = vpack.c.b16 %v708, %v707
        %v712 = vpack.c.b16 %v710, %v709
        %713 = vrot.lane.b32.xlu0 %v591, 48
        %v714 = vpop.permute.xlu0 %713
        %715 = vrot.lane.b32.xlu0 %v592, 48
        %v716 = vpop.permute.xlu0 %715
        %717 = vrot.lane.b32.xlu0 %v593, 48
        %v718 = vpop.permute.xlu0 %717
        %719 = vrot.lane.b32.xlu0 %v594, 48
        %v720 = vpop.permute.xlu0 %719
        %721 = vrot.lane.b32.xlu0 %v595, 48
        %v722 = vpop.permute.xlu0 %721
        %723 = vrot.lane.b32.xlu0 %v596, 48
        %v724 = vpop.permute.xlu0 %723
        %725 = vrot.lane.b32.xlu0 %v711, 48
        %v726 = vpop.permute.xlu0 %725
        %727 = vrot.lane.b32.xlu0 %v712, 48
        %v728 = vpop.permute.xlu0 %727
        %v731 = vunpack.c.l.b16 %v547
        %v732 = vunpack.c.l.b16 %v550
        %v733 = vpack.c.b16 %v731, %v731
        %v734 = vpack.c.b16 %v732, %v732
        %v735 = vrot.slane %v711, 1
        %v736 = vrot.slane %v733, 1
        %v737 = vsel %vm621, %v735, %v736
        %v738 = vrot.slane %v712, 1
        %v739 = vrot.slane %v734, 1
        %v740 = vsel %vm621, %v738, %v739
        %741 = vrot.lane.b32.xlu0 %v630, 64
        %v742 = vpop.permute.xlu0 %741
        %743 = vrot.lane.b32.xlu0 %v633, 64
        %v744 = vpop.permute.xlu0 %743
        %745 = vrot.lane.b32.xlu0 %v636, 64
        %v746 = vpop.permute.xlu0 %745
        %747 = vrot.lane.b32.xlu0 %v639, 64
        %v748 = vpop.permute.xlu0 %747
        %749 = vrot.lane.b32.xlu0 %v642, 64
        %v750 = vpop.permute.xlu0 %749
        %751 = vrot.lane.b32.xlu0 %v645, 64
        %v752 = vpop.permute.xlu0 %751
        %753 = vrot.lane.b32.xlu0 %v737, 64
        %v754 = vpop.permute.xlu0 %753
        %755 = vrot.lane.b32.xlu0 %v740, 64
        %v756 = vpop.permute.xlu0 %755
        %v757 = vrot.slane %v711, 2
        %v758 = vrot.slane %v733, 2
        %v759 = vsel %vm662, %v757, %v758
        %v760 = vrot.slane %v712, 2
        %v761 = vrot.slane %v734, 2
        %v762 = vsel %vm662, %v760, %v761
        %763 = vrot.lane.b32.xlu0 %v671, 80
        %v764 = vpop.permute.xlu0 %763
        %765 = vrot.lane.b32.xlu0 %v674, 80
        %v766 = vpop.permute.xlu0 %765
        %767 = vrot.lane.b32.xlu0 %v677, 80
        %v768 = vpop.permute.xlu0 %767
        %769 = vrot.lane.b32.xlu0 %v680, 80
        %v770 = vpop.permute.xlu0 %769
        %771 = vrot.lane.b32.xlu0 %v683, 80
        %v772 = vpop.permute.xlu0 %771
        %773 = vrot.lane.b32.xlu0 %v686, 80
        %v774 = vpop.permute.xlu0 %773
        %775 = vrot.lane.b32.xlu0 %v759, 80
        %v776 = vpop.permute.xlu0 %775
        %777 = vrot.lane.b32.xlu0 %v762, 80
        %v778 = vpop.permute.xlu0 %777
        %v783 = vunpack.c.l.b16 %v551
        %v784 = vunpack.c.l.b16 %v552
        %v785 = vunpack.c.l.b16 %v554
        %v786 = vunpack.c.l.b16 %v555
        %v787 = vpack.c.b16 %v784, %v783
        %v788 = vpack.c.b16 %v786, %v785
        %789 = vrot.lane.b32.xlu0 %v593, 96
        %v790 = vpop.permute.xlu0 %789
        %791 = vrot.lane.b32.xlu0 %v594, 96
        %v792 = vpop.permute.xlu0 %791
        %793 = vrot.lane.b32.xlu0 %v595, 96
        %v794 = vpop.permute.xlu0 %793
        %795 = vrot.lane.b32.xlu0 %v596, 96
        %v796 = vpop.permute.xlu0 %795
        %797 = vrot.lane.b32.xlu0 %v711, 96
        %v798 = vpop.permute.xlu0 %797
        %799 = vrot.lane.b32.xlu0 %v712, 96
        %v800 = vpop.permute.xlu0 %799
        %801 = vrot.lane.b32.xlu0 %v787, 96
        %v802 = vpop.permute.xlu0 %801
        %803 = vrot.lane.b32.xlu0 %v788, 96
        %v804 = vpop.permute.xlu0 %803
        %v807 = vunpack.c.l.b16 %v553
        %v808 = vunpack.c.l.b16 %v556
        %v809 = vpack.c.b16 %v807, %v807
        %v810 = vpack.c.b16 %v808, %v808
        %v811 = vrot.slane %v787, 1
        %v812 = vrot.slane %v809, 1
        %v813 = vsel %vm621, %v811, %v812
        %v814 = vrot.slane %v788, 1
        %v815 = vrot.slane %v810, 1
        %v816 = vsel %vm621, %v814, %v815
        %817 = vrot.lane.b32.xlu0 %v636, 112
        %v818 = vpop.permute.xlu0 %817
        %819 = vrot.lane.b32.xlu0 %v639, 112
        %v820 = vpop.permute.xlu0 %819
        %821 = vrot.lane.b32.xlu0 %v642, 112
        %v822 = vpop.permute.xlu0 %821
        %823 = vrot.lane.b32.xlu0 %v645, 112
        %v824 = vpop.permute.xlu0 %823
        %825 = vrot.lane.b32.xlu0 %v737, 112
        %v826 = vpop.permute.xlu0 %825
        %827 = vrot.lane.b32.xlu0 %v740, 112
        %v828 = vpop.permute.xlu0 %827
        %829 = vrot.lane.b32.xlu0 %v813, 112
        %v830 = vpop.permute.xlu0 %829
        %831 = vrot.lane.b32.xlu0 %v816, 112
        %v832 = vpop.permute.xlu0 %831
        %v833 = vrot.slane %v787, 2
        %v834 = vrot.slane %v809, 2
        %v835 = vsel %vm662, %v833, %v834
        %v836 = vrot.slane %v788, 2
        %v837 = vrot.slane %v810, 2
        %v838 = vsel %vm662, %v836, %v837
        %vm839 = vcmask 130048
        %v842 = vsel %vm839, %v589, %v647
        %v845 = vsel %vm839, %v590, %v649
        %v848 = vsel %vm839, %v591, %v651
        %v851 = vsel %vm839, %v592, %v653
        %v854 = vsel %vm839, %v593, %v655
        %v857 = vsel %vm839, %v594, %v657
        %v860 = vsel %vm839, %v595, %v659
        %v863 = vsel %vm839, %v596, %v661
        %vm864 = vcmask 261120
        %v866 = vsel %vm864, %v842, %v688
        %v868 = vsel %vm864, %v845, %v690
        %v870 = vsel %vm864, %v848, %v692
        %v872 = vsel %vm864, %v851, %v694
        %v874 = vsel %vm864, %v854, %v696
        %v876 = vsel %vm864, %v857, %v698
        %v878 = vsel %vm864, %v860, %v700
        %v880 = vsel %vm864, %v863, %v702
        %vm881 = vcmask 392192
        %v883 = vsel %vm881, %v866, %v714
        %v885 = vsel %vm881, %v868, %v716
        %v887 = vsel %vm881, %v870, %v718
        %v889 = vsel %vm881, %v872, %v720
        %v891 = vsel %vm881, %v874, %v722
        %v893 = vsel %vm881, %v876, %v724
        %v895 = vsel %vm881, %v878, %v726
        %v897 = vsel %vm881, %v880, %v728
        %vm898 = vcmask 523264
        %v900 = vsel %vm898, %v883, %v742
        %v902 = vsel %vm898, %v885, %v744
        %v904 = vsel %vm898, %v887, %v746
        %v906 = vsel %vm898, %v889, %v748
        %v908 = vsel %vm898, %v891, %v750
        %v910 = vsel %vm898, %v893, %v752
        %v912 = vsel %vm898, %v895, %v754
        %v914 = vsel %vm898, %v897, %v756
        %vm915 = vcmask 654336
        %v917 = vsel %vm915, %v900, %v764
        %v919 = vsel %vm915, %v902, %v766
        %v921 = vsel %vm915, %v904, %v768
        %v923 = vsel %vm915, %v906, %v770
        %v925 = vsel %vm915, %v908, %v772
        %v927 = vsel %vm915, %v910, %v774
        %v929 = vsel %vm915, %v912, %v776
        %v931 = vsel %vm915, %v914, %v778
        %vm932 = vcmask 785408
        %v934 = vsel %vm932, %v917, %v790
        %v936 = vsel %vm932, %v919, %v792
        %v938 = vsel %vm932, %v921, %v794
        %v940 = vsel %vm932, %v923, %v796
        %v942 = vsel %vm932, %v925, %v798
        %v944 = vsel %vm932, %v927, %v800
        %v946 = vsel %vm932, %v929, %v802
        %v948 = vsel %vm932, %v931, %v804
        %vm949 = vcmask 916480
        %v951 = vsel %vm949, %v934, %v818
        %v954 = vsel %vm949, %v936, %v820
        %v957 = vsel %vm949, %v938, %v822
        %v960 = vsel %vm949, %v940, %v824
        %v963 = vsel %vm949, %v942, %v826
        %v966 = vsel %vm949, %v944, %v828
        %v969 = vsel %vm949, %v946, %v830
        %v972 = vsel %vm949, %v948, %v832
        %v974 = vld [vmem:[%s1] sm:$0xf]
        %v975 = vld [vmem:[%s1 + $0x4] sm:$0xf]
        %v976 = vld [vmem:[%s1 + $0x8] sm:$0xf]
        %v977 = vld [vmem:[%s1 + $0xc] sm:$0xf]
        %v978 = vld [vmem:[%s1 + $0x10] sm:$0xf]
        %v979 = vld [vmem:[%s1 + $0x14] sm:$0xf]
        %v980 = vld [vmem:[%s1 + $0x18] sm:$0xf]
        %v981 = vld [vmem:[%s1 + $0x1c] sm:$0xf]
        %v982 = vld [vmem:[%s1 + $0x20] sm:$0xf]
        %v983 = vld [vmem:[%s1 + $0x24] sm:$0xf]
        %v984 = vld [vmem:[%s1 + $0x28] sm:$0xf]
        %v985 = vld [vmem:[%s1 + $0x2c] sm:$0xf]
        %v986 = vld [vmem:[%s1 + $0x30] sm:$0xf]
        %v987 = vld [vmem:[%s1 + $0x34] sm:$0xf]
        %v988 = vld [vmem:[%s1 + $0x38] sm:$0xf]
        %v989 = vld [vmem:[%s1 + $0x3c] sm:$0xf]
        %v990 = vld [vmem:[%s1 + $0x40] sm:$0xf]
        %v991 = vld [vmem:[%s1 + $0x44] sm:$0xf]
        %v992 = vld [vmem:[%s2] sm:$0x1]
        %v994 = vlaneseq
        %v995 = vshrl.u32 %v994, 7
        %v996 = vsub.s32 0, %v995
        %v997 = vrot.slane %v992, %v996
        %v1017 = vunpack.c.l.b16 %v974
        %v1018 = vunpack.c.l.b16 %v975
        %v1019 = vunpack.c.l.b16 %v976
        %v1020 = vunpack.c.l.b16 %v977
        %v1021 = vunpack.c.l.b16 %v978
        %v1022 = vunpack.c.l.b16 %v979
        %v1023 = vunpack.c.l.b16 %v980
        %v1024 = vunpack.c.l.b16 %v981
        %v1025 = vunpack.c.l.b16 %v982
        %v1026 = vunpack.c.l.b16 %v983
        %v1027 = vunpack.c.l.b16 %v984
        %v1028 = vunpack.c.l.b16 %v985
        %v1029 = vunpack.c.l.b16 %v986
        %v1030 = vunpack.c.l.b16 %v987
        %v1031 = vunpack.c.l.b16 %v988
        %v1032 = vunpack.c.l.b16 %v989
        %v1033 = vunpack.c.l.b16 %v990
        %v1034 = vunpack.c.l.b16 %v991
        %v1035 = vpack.c.b16 %v1018, %v1017
        %v1036 = vpack.c.b16 %v1020, %v1019
        %v1037 = vpack.c.b16 %v1022, %v1021
        %v1038 = vpack.c.b16 %v1024, %v1023
        %v1039 = vpack.c.b16 %v1026, %v1025
        %v1040 = vpack.c.b16 %v1028, %v1027
        %v1041 = vpack.c.b16 %v1030, %v1029
        %v1042 = vpack.c.b16 %v1032, %v1031
        %v1043 = vpack.c.b16 %v1034, %v1033
        %v1054 = vsel %vm839, %v677, 0
        %v1057 = vsel %vm839, %v680, 0
        %v1060 = vsel %vm839, %v683, 0
        %v1063 = vsel %vm839, %v686, 0
        %v1066 = vsel %vm839, %v759, 0
        %v1069 = vsel %vm839, %v762, 0
        %v1072 = vsel %vm839, %v835, 0
        %v1075 = vsel %vm839, %v838, 0
        %1077 = vmatprep.subr.bf16.mxu0 0
        %1078 = vmatpush1.bf16.msra.mxu0 %v1035
        %1079 = vmatprep.subr.bf16.mxu0 0
        %1080 = vmatpush1.bf16.msra.mxu0 %v1036
        %1081 = vmatprep.subr.bf16.mxu0 0
        %1082 = vmatpush1.bf16.msra.mxu0 %v1037
        %1083 = vmatprep.subr.bf16.mxu0 0
        %1084 = vmatpush1.bf16.msra.mxu0 %v1038
        %1085 = vmatprep.subr.bf16.mxu0 0
        %1086 = vmatpush1.bf16.msra.mxu0 %v1039
        %1087 = vmatprep.subr.bf16.mxu0 0
        %1088 = vmatpush1.bf16.msra.mxu0 %v1040
        %1089 = vmatprep.subr.bf16.mxu0 0
        %1090 = vmatpush1.bf16.msra.mxu0 %v1041
        %1091 = vmatprep.subr.bf16.mxu0 0
        %1092 = vmatpush1.bf16.msra.mxu0 %v1042
        %1093 = vmatprep.subr.bf16.mxu0 0
        %1094 = vmatpush1.bf16.msra.mxu0 %v1043
        %1095 = vmatprep.subr.bf16.mxu0 0
        %1096 = vmatpush1.bf16.msra.mxu0 0
        %1097 = vmatprep.subr.bf16.mxu0 0
        %1098 = vmatpush1.bf16.msra.mxu0 0
        %1099 = vmatprep.subr.bf16.mxu0 0
        %1100 = vmatpush1.bf16.msra.mxu0 0
        %1101 = vmatprep.subr.bf16.mxu0 0
        %1102 = vmatpush1.bf16.msra.mxu0 0
        %1103 = vmatprep.subr.bf16.mxu0 0
        %1104 = vmatpush1.bf16.msra.mxu0 0
        %1105 = vmatprep.subr.bf16.mxu0 0
        %1106 = vmatpush1.bf16.msra.mxu0 0
        %1107 = vmatprep.subr.bf16.mxu0 0
        %1108 = vmatpush1.bf16.msra.mxu0 0
        %1109 = vmatprep.mubr.bf16.mxu0 %v1054
        %1110 = vmatmul.mubr.bf16.gmra.mrb[0].mxu0 %v951
        %v1111 = vpop.f32.mrb[0].mxu0
        %v1112 = vadd.f32 %v997, %v1111
        %v1113 = vpop.f32.mrb[0].mxu0
        %v1114 = vpop.f32.mrb[0].mxu0
        %v1115 = vadd.f32 %v997, %v1114
        %v1116 = vpop.f32.mrb[0].mxu0
        %1117 = vmatprep.mubr.bf16.mxu0 %v1057
        %1118 = vmatmul.mubr.bf16.gmra.mrb[0].mxu0 %v954
        %v1119 = vpop.f32.mrb[0].mxu0
        %v1120 = vadd.f32 %v997, %v1119
        %v1121 = vpop.f32.mrb[0].mxu0
        %v1122 = vpop.f32.mrb[0].mxu0
        %v1123 = vadd.f32 %v997, %v1122
        %v1124 = vpop.f32.mrb[0].mxu0
        %1125 = vmatprep.mubr.bf16.mxu0 %v1060
        %1126 = vmatmul.mubr.bf16.gmra.mrb[0].mxu0 %v957
        %v1127 = vpop.f32.mrb[0].mxu0
        %v1128 = vadd.f32 %v997, %v1127
        %v1129 = vpop.f32.mrb[0].mxu0
        %v1130 = vpop.f32.mrb[0].mxu0
        %v1131 = vadd.f32 %v997, %v1130
        %v1132 = vpop.f32.mrb[0].mxu0
        %1133 = vmatprep.mubr.bf16.mxu0 %v1063
        %1134 = vmatmul.mubr.bf16.gmra.mrb[0].mxu0 %v960
        %v1135 = vpop.f32.mrb[0].mxu0
        %v1136 = vadd.f32 %v997, %v1135
        %v1137 = vpop.f32.mrb[0].mxu0
        %v1138 = vpop.f32.mrb[0].mxu0
        %v1139 = vadd.f32 %v997, %v1138
        %v1140 = vpop.f32.mrb[0].mxu0
        %1141 = vmatprep.mubr.bf16.mxu0 %v1066
        %1142 = vmatmul.mubr.bf16.gmra.mrb[0].mxu0 %v963
        %v1143 = vpop.f32.mrb[0].mxu0
        %v1144 = vadd.f32 %v997, %v1143
        %v1145 = vpop.f32.mrb[0].mxu0
        %v1146 = vpop.f32.mrb[0].mxu0
        %v1147 = vadd.f32 %v997, %v1146
        %v1148 = vpop.f32.mrb[0].mxu0
        %1149 = vmatprep.mubr.bf16.mxu0 %v1069
        %1150 = vmatmul.mubr.bf16.gmra.mrb[0].mxu0 %v966
        %v1151 = vpop.f32.mrb[0].mxu0
        %v1152 = vadd.f32 %v997, %v1151
        %v1153 = vpop.f32.mrb[0].mxu0
        %v1154 = vpop.f32.mrb[0].mxu0
        %v1155 = vadd.f32 %v997, %v1154
        %v1156 = vpop.f32.mrb[0].mxu0
        %1157 = vmatprep.mubr.bf16.mxu0 %v1072
        %1158 = vmatmul.mubr.bf16.gmra.mrb[0].mxu0 %v969
        %v1159 = vpop.f32.mrb[0].mxu0
        %v1160 = vadd.f32 %v997, %v1159
        %v1161 = vpop.f32.mrb[0].mxu0
        %v1162 = vpop.f32.mrb[0].mxu0
        %v1163 = vadd.f32 %v997, %v1162
        %v1164 = vpop.f32.mrb[0].mxu0
        %1165 = vmatprep.mubr.bf16.mxu0 %v1075
        %1166 = vmatmul.mubr.bf16.gmra.mrb[0].mxu0 %v972
        %v1167 = vpop.f32.mrb[0].mxu0
        %v1168 = vadd.f32 %v997, %v1167
        %v1169 = vpop.f32.mrb[0].mxu0
        %v1170 = vpop.f32.mrb[0].mxu0
        %v1171 = vadd.f32 %v997, %v1170
        %v1172 = vpop.f32.mrb[0].mxu0
        %1173 = vdwg.mxu0
        %vm1174 = vcmp.ge.f32.partialorder %v1112, 0.0
        %vm1175 = vcmp.ge.f32.partialorder %v1115, 0.0
        %vm1176 = vcmp.ge.f32.partialorder %v1120, 0.0
        %vm1177 = vcmp.ge.f32.partialorder %v1123, 0.0
        %vm1178 = vcmp.ge.f32.partialorder %v1128, 0.0
        %vm1179 = vcmp.ge.f32.partialorder %v1131, 0.0
        %vm1180 = vcmp.ge.f32.partialorder %v1136, 0.0
        %vm1181 = vcmp.ge.f32.partialorder %v1139, 0.0
        %vm1182 = vcmp.ge.f32.partialorder %v1144, 0.0
        %vm1183 = vcmp.ge.f32.partialorder %v1147, 0.0
        %vm1184 = vcmp.ge.f32.partialorder %v1152, 0.0
        %vm1185 = vcmp.ge.f32.partialorder %v1155, 0.0
        %vm1186 = vcmp.ge.f32.partialorder %v1160, 0.0
        %vm1187 = vcmp.ge.f32.partialorder %v1163, 0.0
        %vm1188 = vcmp.ge.f32.partialorder %v1168, 0.0
        %vm1189 = vcmp.ge.f32.partialorder %v1171, 0.0
        %v1190 = vmul.f32 %v1112, 0.01
        %v1191 = vmul.f32 %v1115, 0.01
        %v1192 = vmul.f32 %v1120, 0.01
        %v1193 = vmul.f32 %v1123, 0.01
        %v1194 = vmul.f32 %v1128, 0.01
        %v1195 = vmul.f32 %v1131, 0.01
        %v1196 = vmul.f32 %v1136, 0.01
        %v1197 = vmul.f32 %v1139, 0.01
        %v1198 = vmul.f32 %v1144, 0.01
        %v1199 = vmul.f32 %v1147, 0.01
        %v1200 = vmul.f32 %v1152, 0.01
        %v1201 = vmul.f32 %v1155, 0.01
        %v1202 = vmul.f32 %v1160, 0.01
        %v1203 = vmul.f32 %v1163, 0.01
        %v1204 = vmul.f32 %v1168, 0.01
        %v1205 = vmul.f32 %v1171, 0.01
        %v1206 = vsel %vm1174, %v1112, %v1190
        %v1207 = vsel %vm1175, %v1115, %v1191
        %v1208 = vsel %vm1176, %v1120, %v1192
        %v1209 = vsel %vm1177, %v1123, %v1193
        %v1210 = vsel %vm1178, %v1128, %v1194
        %v1211 = vsel %vm1179, %v1131, %v1195
        %v1212 = vsel %vm1180, %v1136, %v1196
        %v1213 = vsel %vm1181, %v1139, %v1197
        %v1214 = vsel %vm1182, %v1144, %v1198
        %v1215 = vsel %vm1183, %v1147, %v1199
        %v1216 = vsel %vm1184, %v1152, %v1200
        %v1217 = vsel %vm1185, %v1155, %v1201
        %v1218 = vsel %vm1186, %v1160, %v1202
        %v1219 = vsel %vm1187, %v1163, %v1203
        %v1220 = vsel %vm1188, %v1168, %v1204
        %v1221 = vsel %vm1189, %v1171, %v1205
        %v1222 = vpack.c.bf16 %v1207, %v1206
        %v1223 = vpack.c.bf16 %v1209, %v1208
        %v1224 = vpack.c.bf16 %v1211, %v1210
        %v1225 = vpack.c.bf16 %v1213, %v1212
        %v1226 = vpack.c.bf16 %v1215, %v1214
        %v1227 = vpack.c.bf16 %v1217, %v1216
        %v1228 = vpack.c.bf16 %v1219, %v1218
        %v1229 = vpack.c.bf16 %v1221, %v1220
        %v1238 = vunpack.c.l.b16 %v1222
        %v1239 = vunpack.c.h.b16 %v1222
        %v1240 = vunpack.c.l.b16 %v1223
        %v1241 = vunpack.c.h.b16 %v1223
        %v1242 = vunpack.c.l.b16 %v1224
        %v1243 = vunpack.c.h.b16 %v1224
        %v1244 = vunpack.c.l.b16 %v1225
        %v1245 = vunpack.c.h.b16 %v1225
        %v1246 = vunpack.c.l.b16 %v1226
        %v1247 = vunpack.c.h.b16 %v1226
        %v1248 = vunpack.c.l.b16 %v1227
        %v1249 = vunpack.c.h.b16 %v1227
        %v1250 = vunpack.c.l.b16 %v1228
        %v1251 = vunpack.c.h.b16 %v1228
        %v1252 = vunpack.c.l.b16 %v1229
        %v1253 = vunpack.c.h.b16 %v1229
        %v1254 = vpack.c.b16 %v1238, %v1238
        %v1255 = vpack.c.b16 %v1239, %v1239
        %v1256 = vpack.c.b16 %v1240, %v1240
        %v1257 = vpack.c.b16 %v1241, %v1241
        %v1258 = vpack.c.b16 %v1242, %v1242
        %v1259 = vpack.c.b16 %v1243, %v1243
        %v1260 = vpack.c.b16 %v1244, %v1244
        %v1261 = vpack.c.b16 %v1245, %v1245
        %v1262 = vpack.c.b16 %v1246, %v1246
        %v1263 = vpack.c.b16 %v1247, %v1247
        %v1264 = vpack.c.b16 %v1248, %v1248
        %v1265 = vpack.c.b16 %v1249, %v1249
        %v1266 = vpack.c.b16 %v1250, %v1250
        %v1267 = vpack.c.b16 %v1251, %v1251
        %v1268 = vpack.c.b16 %v1252, %v1252
        %v1269 = vpack.c.b16 %v1253, %v1253
        %vm1286 = vcmask 125952
        %1287 = vst.msk [vmem:[%s202] sm:$0xf] %vm1286, %v1254
        %1288 = vst.msk [vmem:[%s202 + $0x4] sm:$0xf] %vm1286, %v1255
        %1289 = vst.msk [vmem:[%s202 + $0x8] sm:$0xf] %vm1286, %v1256
        %1290 = vst.msk [vmem:[%s202 + $0xc] sm:$0xf] %vm1286, %v1257
        %1291 = vst.msk [vmem:[%s202 + $0x10] sm:$0xf] %vm1286, %v1258
        %1292 = vst.msk [vmem:[%s202 + $0x14] sm:$0xf] %vm1286, %v1259
        %1293 = vst.msk [vmem:[%s202 + $0x18] sm:$0xf] %vm1286, %v1260
        %1294 = vst.msk [vmem:[%s202 + $0x1c] sm:$0xf] %vm1286, %v1261
        %1295 = vst.msk [vmem:[%s202 + $0x20] sm:$0xf] %vm1286, %v1262
        %1296 = vst.msk [vmem:[%s202 + $0x24] sm:$0xf] %vm1286, %v1263
        %1297 = vst.msk [vmem:[%s202 + $0x28] sm:$0xf] %vm1286, %v1264
        %1298 = vst.msk [vmem:[%s202 + $0x2c] sm:$0xf] %vm1286, %v1265
        %1299 = vst.msk [vmem:[%s202 + $0x30] sm:$0xf] %vm1286, %v1266
        %1300 = vst.msk [vmem:[%s202 + $0x34] sm:$0xf] %vm1286, %v1267
        %1301 = vst.msk [vmem:[%s202 + $0x38] sm:$0xf] %vm1286, %v1268
        %1302 = vst.msk [vmem:[%s202 + $0x3c] sm:$0xf] %vm1286, %v1269
        %s1303 = sand.u32 %s110, 1
        %s1304 = scalar_lea.sflag [#allocation5], %s1303
        %s1305 = sand.u32 %s110, 1
        %s1306 = smul.addr %s1305, 64
        %s1307 = scalar_lea.vmem [#allocation6], %s1306
        // Predicated region
        $region41: #{tpu_custom_call.1} parent=31 // pred_check
          %p1308 = pneg %p120
        $region42: #{tpu_custom_call.1} parent=31 // pred_check_branch
          %1310 = sbr.rel (%p1308) target = $region44
        $region43: #{tpu_custom_call.1} parent=31 // pred_region
          %s1311 = smul.u32 8, %s25
          %s1313 = ssub.s32 1024, 1024
          %1314 = vsyncadd %s1304, %s1313
          %s1315 = smul.addr %s1311, 2
          %s1316 = smul.addr %s24, 32
          %s1317 = sadd.s32 %s1315, %s1316
          %s1318 = smul.addr %s1317, 64
          %s1319 = scalar_lea.hbm %s3, %s1318
          %s1320 = sshll.u32 %s1307, 4
          %s1321 = int_to_ptr.vmem [resolvable:$true] %s1320
          %1326 = dma.vmem_to_hbm [thread:$0]  %s1321, 1024, %s1319, %s1304, 64, 64, 4
        $region44: #{tpu_custom_call.1} parent=31 // pred_fallthru
          _
      $region32: #{tpu_custom_call.1} parent=5 // pred_fallthru
        _
      %p1327 = scmp.le.s32.totalorder 2, %s15
      // Predicated region
      $region45: #{tpu_custom_call.1} parent=5 // pred_check
        %p1328 = pneg %p1327
      $region46: #{tpu_custom_call.1} parent=5 // pred_check_branch
        %1330 = sbr.rel (%p1328) target = $region48
      $region47: #{tpu_custom_call.1} parent=5 // pred_region
        %s1331 = ssub.s32 %s15, 2
        // Predicated region
        $region49: #{tpu_custom_call.1} parent=47 // pred_check
          %p1332 = pneg %p126
        $region50: #{tpu_custom_call.1} parent=47 // pred_check_branch
          %1334 = sbr.rel (%p1332) target = $region52
        $region51: #{tpu_custom_call.1} parent=47 // pred_region
          %s1335 = sand.u32 %s111, 1
          %s1336 = scalar_lea.sflag [#allocation5], %s1335
          %s1337 = sand.u32 %s111, 1
          %s1338 = smul.addr %s1337, 64
          %s1339 = scalar_lea.vmem [#allocation6], %s1338
          %1340 = dma.done %s1336, 1024
        $region52: #{tpu_custom_call.1} parent=47 // pred_fallthru
          _
      $region48: #{tpu_custom_call.1} parent=5 // pred_fallthru
        _
    $region6: #{tpu_custom_call.1} parent=1 // loop_footer
      %s19 = sadd.s32 1, %s15
    $region7: #{tpu_custom_call.1} parent=1 // loop_footer_branch
      %14 = sbr.rel target = $region3
    $region8: #{tpu_custom_call.1} parent=1 // loop_exit
      _
    %1341 = vsyncpa [#allocation4], 1
    %s1342 = scalar_lea.sflag [#allocation4], 1
    %1343 = vsyncpa %s1342, 1
    %1344 = vsyncpa [#allocation5], 1
    %s1345 = scalar_lea.sflag [#allocation5], 1
    %1346 = vsyncpa %s1345, 1

</llo_original>
